<compile_context>
chip_gen: v7x
topology: tpu7x:2x2x1
jax: 0.10.0
libtpu: 0.0.40
codegen_flags: <defaults>
</compile_context>

<pallas_src>
import jax
import jax.numpy as jnp
from jax.experimental import pallas as pl
from jax.experimental.pallas import tpu as pltpu


def _proj_kernel(patches_ref, wt_ref, pos_ref, out_ref):
    # patches_ref: (1, TM, K)   compute_dtype
    # wt_ref:      (K, TE)      compute_dtype   (stays resident across i, b)
    # pos_ref:     (TM, TE)     f32  (pos + bias; cls row pre-folded)
    # out_ref:     (1, TM, TE)
    acc = jnp.dot(patches_ref[0], wt_ref[...], preferred_element_type=jnp.float32)
    out_ref[0] = (acc + pos_ref[...]).astype(out_ref.dtype)


def _vmem_block_budget():
    """Bytes allowed for the double-buffered block working set (per generation)."""
    try:
        cap = pltpu.get_tpu_info().vmem_capacity_bytes
    except Exception:
        cap = 64 * 1024 * 1024  # assume the smallest (v7x per-core VMEM)
    # ~1/3 of physical VMEM, capped so v5e/v6e stay comfortably under limits.
    return min(cap // 3, 40 * 1024 * 1024)


def patch_embedding(x, conv_w, conv_b, pos_emb, cls_token=None, *, patch_size=4,
                    swin=False, compute_dtype=jnp.bfloat16, max_tm=1024):
    """Forward pass of PatchEmbedding.

    x:         (B, C, H, W)  NCHW
    conv_w:    (E, C, p, p)  Conv2d weight
    conv_b:    (E,)          Conv2d bias
    pos_emb:   (1, N+1, E)   (or (1, N, E) when swin=True)
    cls_token: (1, 1, E)     (ignored when swin=True)
    returns:   (B, N+1, E)   (or (B, N, E) when swin=True)
    """
    B, C, H, W = x.shape
    p = patch_size
    if H % p != 0 or W % p != 0:
        raise ValueError("Image size must be divisible by patch size")
    nh, nw = H // p, W // p
    N = nh * nw
    E = conv_w.shape[0]
    K = C * p * p
    out_dtype = x.dtype
    N_tot = N if swin else N + 1

    # --- XLA-side prep (small / fusible relayouts) ---------------------------
    # Patch extraction in (c, pi, pj) order -> contraction bit-matches the conv.
    patches = (x.reshape(B, C, nh, p, nw, p)
                 .transpose(0, 2, 4, 1, 3, 5)
                 .reshape(B, N, K)
                 .astype(compute_dtype))
    if not swin:
        # cls handled inside the kernel: zero patch row projects to exactly 0,
        # and the matching pos row carries (cls + pos[0]).
        patches = jnp.pad(patches, ((0, 0), (1, 0), (0, 0)))

    wt = conv_w.reshape(E, K).T.astype(compute_dtype)                 # (K, E)

    if swin:
        pos_bias = pos_emb.reshape(N, E) + conv_b[None, :]
    else:
        pos_tab = pos_emb.reshape(N + 1, E)
        cls_row = cls_token.reshape(1, E) + pos_tab[0:1]
        pos_bias = jnp.concatenate([cls_row, pos_tab[1:] + conv_b[None, :]],
                                   axis=0)
    pos_bias = pos_bias.astype(jnp.float32)                           # (N_tot, E)

    # --- lane-dense output: pad E up to a multiple of 128 --------------------
    E_pad = ((E + 127) // 128) * 128
    if E_pad != E:
        wt = jnp.pad(wt, ((0, 0), (0, E_pad - E)))
        pos_bias = jnp.pad(pos_bias, ((0, 0), (0, E_pad - E)))

    # --- tiling ---------------------------------------------------------------
    TE = E_pad if E_pad <= 1024 else 1024
    budget = _vmem_block_budget()
    out_bpe = jnp.dtype(out_dtype).itemsize
    cd_bpe = jnp.dtype(compute_dtype).itemsize

    def blocks_bytes(tm):
        per = (tm * K * cd_bpe      # patches block
               + K * TE * cd_bpe    # weight block
               + tm * TE * 4        # pos block (f32)
               + tm * TE * out_bpe)  # output block
        return 2 * per              # double-buffered

    TM = min(N_tot, max_tm)
    while TM > 8 and blocks_bytes(TM) > budget:
        TM //= 2
    if TM < N_tot:
        TM = max(8, (TM // 8) * 8)  # non-full token tiles must be multiples of 8

    grid = (pl.cdiv(E_pad, TE), pl.cdiv(N_tot, TM), B)  # batch innermost
    vmem_limit = int(min(max(blocks_bytes(TM) + (8 << 20), 16 << 20), 64 << 20))

    proj = pl.pallas_call(
        _proj_kernel,
        out_shape=jax.ShapeDtypeStruct((B, N_tot, E_pad), out_dtype),
        grid=grid,
        in_specs=[
            pl.BlockSpec((1, TM, K), lambda j, i, b: (b, i, 0)),   # patches
            pl.BlockSpec((K, TE), lambda j, i, b: (0, j)),          # weight
            pl.BlockSpec((TM, TE), lambda j, i, b: (i, j)),         # pos+bias
        ],
        out_specs=pl.BlockSpec((1, TM, TE), lambda j, i, b: (b, i, j)),
        compiler_params=pltpu.CompilerParams(
            dimension_semantics=("parallel", "parallel", "parallel"),
            allow_input_fusion=[True, True, True],
            vmem_limit_bytes=vmem_limit,
        ),
    )(patches, wt, pos_bias)

    if E_pad != E:
        proj = proj[:, :, :E]
    return proj


def _reference(x, conv_w, conv_b, pos_emb, cls_token, patch_size, swin):
    """Pure-JAX reference mirroring the PyTorch forward (full-precision conv)."""
    B = x.shape[0]
    proj = jax.lax.conv_general_dilated(
        x, conv_w, window_strides=(patch_size, patch_size), padding="VALID",
        dimension_numbers=("NCHW", "OIHW", "NCHW"),
        precision=jax.lax.Precision.HIGHEST)
    proj = proj + conv_b[None, :, None, None]
    E = conv_w.shape[0]
    y = proj.reshape(B, E, -1).transpose(0, 2, 1)      # flatten(2).transpose(1,2)
    if not swin:
        cls = jnp.broadcast_to(cls_token, (B, 1, E))
        y = jnp.concatenate([cls, y], axis=1)
    return y + pos_emb


if __name__ == "__main__":
    # Small shapes: img_size=16, patch_size=4, in_channels=4, embed_dim=32, B=2
    B, C, H, W = 2, 4, 16, 16
    p = 4
    E = 32
    N = (H // p) * (W // p)

    key = jax.random.PRNGKey(0)
    kx, kw, kb, kc, kp, kps = jax.random.split(key, 6)
    x = jax.random.normal(kx, (B, C, H, W), dtype=jnp.float32)
    conv_w = jax.random.normal(kw, (E, C, p, p), dtype=jnp.float32) * 0.05
    conv_b = jax.random.normal(kb, (E,), dtype=jnp.float32) * 0.05
    cls_token = jax.random.normal(kc, (1, 1, E), dtype=jnp.float32)
    pos_emb = jax.random.normal(kp, (1, N + 1, E), dtype=jnp.float32)
    pos_emb_swin = jax.random.normal(kps, (1, N, E), dtype=jnp.float32)

    ref = _reference(x, conv_w, conv_b, pos_emb, cls_token, p, swin=False)

    # 1) f32 compute path (tolerance leaves headroom for MXU pass precision).
    out_f32 = jax.block_until_ready(
        patch_embedding(x, conv_w, conv_b, pos_emb, cls_token,
                        patch_size=p, swin=False, compute_dtype=jnp.float32))
    assert out_f32.shape == (B, N + 1, E), out_f32.shape
    assert jnp.allclose(out_f32, ref, atol=5e-3, rtol=5e-3), "f32 mismatch vs reference"

    # 2) default fast path (bf16 operands, f32 accumulation). Tolerance is for
    #    K=64; it should be scaled ~sqrt(K) for larger patch/channel configs.
    out_bf16 = jax.block_until_ready(
        patch_embedding(x, conv_w, conv_b, pos_emb, cls_token,
                        patch_size=p, swin=False))
    assert out_bf16.shape == (B, N + 1, E), out_bf16.shape
    assert jnp.allclose(out_bf16, ref, atol=5e-2, rtol=5e-2), "bf16 mismatch vs reference"

    # 3) swin variant (no cls token).
    ref_swin = _reference(x, conv_w, conv_b, pos_emb_swin, None, p, swin=True)
    out_swin = jax.block_until_ready(
        patch_embedding(x, conv_w, conv_b, pos_emb_swin, None,
                        patch_size=p, swin=True, compute_dtype=jnp.float32))
    assert out_swin.shape == (B, N, E), out_swin.shape
    assert jnp.allclose(out_swin, ref_swin, atol=5e-3, rtol=5e-3), "swin mismatch vs reference"

    # 4) partial last token tile (N_tot=17 -> tiles of 8/8/1) exercises masking.
    out_part = jax.block_until_ready(
        patch_embedding(x, conv_w, conv_b, pos_emb, cls_token,
                        patch_size=p, swin=False, compute_dtype=jnp.float32,
                        max_tm=8))
    assert jnp.allclose(out_part, ref, atol=5e-3, rtol=5e-3), "partial-tile mismatch"

    # 5) lane-aligned embed dim (no pad/slice path): E=128.
    B2, C2, H2, W2, E2 = 2, 3, 8, 8, 128
    N2 = (H2 // p) * (W2 // p)
    k2 = jax.random.split(jax.random.PRNGKey(1), 5)
    x2 = jax.random.normal(k2[0], (B2, C2, H2, W2), dtype=jnp.float32)
    w2 = jax.random.normal(k2[1], (E2, C2, p, p), dtype=jnp.float32) * 0.05
    b2 = jax.random.normal(k2[2], (E2,), dtype=jnp.float32) * 0.05
    cls2 = jax.random.normal(k2[3], (1, 1, E2), dtype=jnp.float32)
    pos2 = jax.random.normal(k2[4], (1, N2 + 1, E2), dtype=jnp.float32)
    ref2 = _reference(x2, w2, b2, pos2, cls2, p, swin=False)
    out2 = jax.block_until_ready(
        patch_embedding(x2, w2, b2, pos2, cls2, patch_size=p, swin=False,
                        compute_dtype=jnp.float32))
    assert out2.shape == (B2, N2 + 1, E2), out2.shape
    assert jnp.allclose(out2, ref2, atol=5e-3, rtol=5e-3), "E=128 mismatch vs reference"

    print("KERNEL_OK")
</pallas_src>

<mosaic_0001>
module attributes {stable_mosaic.version = 11 : i64} {
  func.func @_proj_kernel(%arg0: i32, %arg1: i32, %arg2: i32, %arg3: memref<1x17x64xf32, #tpu.memory_space<vmem>>, %arg4: memref<64x128xf32, #tpu.memory_space<vmem>>, %arg5: memref<17x128xf32, #tpu.memory_space<vmem>>, %arg6: memref<1x17x128xf32, #tpu.memory_space<vmem>>) attributes {dimension_semantics = [#tpu.dimension_semantics<parallel>, #tpu.dimension_semantics<parallel>, #tpu.dimension_semantics<parallel>], iteration_bounds = array<i64: 1, 1, 2>, scalar_prefetch = 0 : i64, scratch_operands = 0 : i64, tpu.core_type = #tpu.core_type<tc>, window_params = [{transform_indices = @transform_0, window_bounds = array<i64: 1, 17, 64>}, {transform_indices = @transform_1, window_bounds = array<i64: 64, 128>}, {transform_indices = @transform_2, window_bounds = array<i64: 17, 128>}, {transform_indices = @transform_3, window_bounds = array<i64: 1, 17, 128>}]} {
    %c0 = arith.constant 0 : index
    %c0_0 = arith.constant 0 : index
    %c0_1 = arith.constant 0 : index
    %0 = vector.load %arg3[%c0, %c0_0, %c0_1] : memref<1x17x64xf32, #tpu.memory_space<vmem>>, vector<1x17x64xf32>
    %1 = vector.shape_cast %0 : vector<1x17x64xf32> to vector<17x64xf32>
    %c0_2 = arith.constant 0 : index
    %c0_3 = arith.constant 0 : index
    %2 = vector.load %arg4[%c0_2, %c0_3] : memref<64x128xf32, #tpu.memory_space<vmem>>, vector<64x128xf32>
    %cst = arith.constant dense<0.000000e+00> : vector<17x128xf32>
    %3 = tpu.matmul %1, %2, %cst {dimension_numbers = #tpu.dot_dimension_numbers<[1], [0], [0], [1], [0, 0, 1, 1], [], []>} : vector<17x64xf32>, vector<64x128xf32>, vector<17x128xf32> -> vector<17x128xf32>
    %c0_4 = arith.constant 0 : index
    %c0_5 = arith.constant 0 : index
    %4 = vector.load %arg5[%c0_4, %c0_5] : memref<17x128xf32, #tpu.memory_space<vmem>>, vector<17x128xf32>
    %5 = arith.addf %3, %4 : vector<17x128xf32>
    %c0_6 = arith.constant 0 : index
    %c0_7 = arith.constant 0 : index
    %c0_8 = arith.constant 0 : index
    %6 = vector.load %arg6[%c0_6, %c0_7, %c0_8] : memref<1x17x128xf32, #tpu.memory_space<vmem>>, vector<1x17x128xf32>
    %7 = vector.shape_cast %6 : vector<1x17x128xf32> to vector<17x128xf32>
    %8 = vector.shape_cast %5 : vector<17x128xf32> to vector<1x17x128xf32>
    tpu.vector_store %arg6[%c0_6, %c0_7, %c0_8], %8 {strides = array<i32>} : memref<1x17x128xf32, #tpu.memory_space<vmem>>, vector<1x17x128xf32>,
    return
  }
  func.func @transform_0(%arg0: i32, %arg1: i32, %arg2: i32) -> (i32, i32, i32) {
    %c0_i32 = arith.constant 0 : i32
    %c0_i32_0 = arith.constant 0 : i32
    return %arg2, %arg1, %c0_i32 : i32, i32, i32
  }
  func.func @transform_1(%arg0: i32, %arg1: i32, %arg2: i32) -> (i32, i32) {
    %c0_i32 = arith.constant 0 : i32
    %c0_i32_0 = arith.constant 0 : i32
    return %c0_i32, %arg0 : i32, i32
  }
  func.func @transform_2(%arg0: i32, %arg1: i32, %arg2: i32) -> (i32, i32) {
    %c0_i32 = arith.constant 0 : i32
    return %arg1, %arg0 : i32, i32
  }
  func.func @transform_3(%arg0: i32, %arg1: i32, %arg2: i32) -> (i32, i32, i32) {
    %c0_i32 = arith.constant 0 : i32
    return %arg2, %arg1, %arg0 : i32, i32, i32
  }
}

</mosaic_0001>

<llo_original>
// kernel: tpu_custom_call.1
$region0: #{tpu_custom_call.1}
  #allocation0 [shape = 'u32[]', space=smem, size = 0x4, offset = 0x4, fixed_abs, tag = 'smem constant byte address 0x4 - core index']
  #allocation1 [shape = 'u32[144,128]{1,0:T(1,128)}', space=vmem, size = 0x12000, scoped, tag = 'internal scratch']
  %s0 = inlined_call_operand.vmem [shape: f32[2,17,64], index: 0, kind: input, shape index: {}]
  %s1 = inlined_call_operand.vmem [shape: f32[64,128], index: 1, kind: input, shape index: {}]
  %s2 = inlined_call_operand.vmem [shape: f32[17,128], index: 2, kind: input, shape index: {}]
  %s3 = inlined_call_operand.vmem [shape: f32[2,17,128], index: 3, kind: output, shape index: {}]
  %s4 = sld [smem:[#allocation0]]
  $region45: #{tpu_custom_call.1} parent=0
    _
  %s6 = ssub.s32 1, %s4
  %s7 = scalar_select 0, %s6, %s4
  loop: start=0, step=1, limit=4
  $region2: #{tpu_custom_call.1} parent=0 // loop_pre_header
    _
  $region3: #{tpu_custom_call.1} parent=0 // loop_header
    %s9 = sphi 0, %s13
    %p10 = scmp.ge.s32.totalorder %s9, 4
    %s16 = sphi 0, %s35
    %s17 = sphi 0, %s31
    %s18 = sphi 0, %s27
    %s19 = sphi 0, %s16
    %s20 = sphi 0, %s17
    %s21 = sphi 0, %s18
    %s22 = sphi 0, %s19
    %s23 = sphi 0, %s20
    %s24 = sphi 0, %s21
    %s40 = sphi 0, %s42
    %s43 = sphi 0, %s40
    %s44 = sphi 0, %s43
    %s60 = sphi 0, %s44
    %s66 = sphi 0, %s68
    %s69 = sphi 0, %s66
    %s70 = sphi 0, %s69
    %s86 = sphi 0, %s70
    %s94 = sphi 0, %s96
    %s97 = sphi 0, %s94
    %s98 = sphi 0, %s97
    %s114 = sphi 0, %s98
    %s124 = sphi 0, %s126
    %s127 = sphi 0, %s124
    %s128 = sphi 0, %s127
    %s144 = sphi 0, %s128
  $region4: #{tpu_custom_call.1} parent=0 // loop_header_branch
    %12 = sbr.rel (%p10) target = $region8
  $region5: #{tpu_custom_call.1} parent=0 // loop_body
    %s14 = ssub.s32 %s9, 1
    %s15 = ssub.s32 %s9, 2
    %s25 = sadd.s32 1, %s18
    %p26 = scmp.ge.s32.totalorder %s25, 2
    %s27 = scalar_select %p26, 0, %s25
    %s28 = sadd.s32 1, %s17
    %s29 = scalar_select %p26, %s28, %s17
    %p30 = scmp.ge.s32.totalorder %s29, 1
    %s31 = scalar_select %p30, 0, %s29
    %s32 = sadd.s32 1, %s16
    %s33 = scalar_select %p30, %s32, %s16
    %p34 = scmp.ge.s32.totalorder %s33, 1
    %s35 = scalar_select %p34, 0, %s33
    %s36 = ssub.s32 %s18, %s27
    %s37 = ssub.s32 %s17, %s31
    %s38 = sor.u32 %s36, %s37
    %p39 = scmp.eq.s32.totalorder %s38, 0
    %s41 = sadd.s32 %s40, 1
    %s42 = scalar_select %p39, %s40, %s41
    %p45 = pneg %p39
    %p46 = scmp.eq.s32.totalorder %s9, 1
    %p47 = por %p45, %p46
    %p48 = scmp.ne.s32.totalorder %s40, %s43
    %p49 = scmp.eq.s32.totalorder %s9, 0
    %p50 = por %p48, %p49
    %p51 = scmp.ne.s32.totalorder %s40, %s43
    %p52 = scmp.eq.s32.totalorder %s14, 1
    %p53 = por %p51, %p52
    %p54 = scmp.ne.s32.totalorder %s43, %s44
    %p55 = scmp.eq.s32.totalorder %s14, 0
    %p56 = por %p54, %p55
    %p57 = scmp.ne.s32.totalorder %s43, %s44
    %p58 = scmp.eq.s32.totalorder %s15, 1
    %p59 = por %p57, %p58
    %p61 = scmp.ne.s32.totalorder %s44, %s60
    %p62 = scmp.eq.s32.totalorder %s15, 0
    %p63 = por %p61, %p62
    %s64 = ssub.s32 %s16, %s35
    %p65 = scmp.eq.s32.totalorder %s64, 0
    %s67 = sadd.s32 %s66, 1
    %s68 = scalar_select %p65, %s66, %s67
    %p71 = pneg %p65
    %p72 = scmp.eq.s32.totalorder %s9, 1
    %p73 = por %p71, %p72
    %p74 = scmp.ne.s32.totalorder %s66, %s69
    %p75 = scmp.eq.s32.totalorder %s9, 0
    %p76 = por %p74, %p75
    %p77 = scmp.ne.s32.totalorder %s66, %s69
    %p78 = scmp.eq.s32.totalorder %s14, 1
    %p79 = por %p77, %p78
    %p80 = scmp.ne.s32.totalorder %s69, %s70
    %p81 = scmp.eq.s32.totalorder %s14, 0
    %p82 = por %p80, %p81
    %p83 = scmp.ne.s32.totalorder %s69, %s70
    %p84 = scmp.eq.s32.totalorder %s15, 1
    %p85 = por %p83, %p84
    %p87 = scmp.ne.s32.totalorder %s70, %s86
    %p88 = scmp.eq.s32.totalorder %s15, 0
    %p89 = por %p87, %p88
    %s90 = ssub.s32 %s17, %s31
    %s91 = ssub.s32 %s16, %s35
    %s92 = sor.u32 %s90, %s91
    %p93 = scmp.eq.s32.totalorder %s92, 0
    %s95 = sadd.s32 %s94, 1
    %s96 = scalar_select %p93, %s94, %s95
    %p99 = pneg %p93
    %p100 = scmp.eq.s32.totalorder %s9, 1
    %p101 = por %p99, %p100
    %p102 = scmp.ne.s32.totalorder %s94, %s97
    %p103 = scmp.eq.s32.totalorder %s9, 0
    %p104 = por %p102, %p103
    %p105 = scmp.ne.s32.totalorder %s94, %s97
    %p106 = scmp.eq.s32.totalorder %s14, 1
    %p107 = por %p105, %p106
    %p108 = scmp.ne.s32.totalorder %s97, %s98
    %p109 = scmp.eq.s32.totalorder %s14, 0
    %p110 = por %p108, %p109
    %p111 = scmp.ne.s32.totalorder %s97, %s98
    %p112 = scmp.eq.s32.totalorder %s15, 1
    %p113 = por %p111, %p112
    %p115 = scmp.ne.s32.totalorder %s98, %s114
    %p116 = scmp.eq.s32.totalorder %s15, 0
    %p117 = por %p115, %p116
    %s118 = ssub.s32 %s18, %s27
    %s119 = ssub.s32 %s17, %s31
    %s120 = sor.u32 %s118, %s119
    %s121 = ssub.s32 %s16, %s35
    %s122 = sor.u32 %s120, %s121
    %p123 = scmp.eq.s32.totalorder %s122, 0
    %s125 = sadd.s32 %s124, 1
    %s126 = scalar_select %p123, %s124, %s125
    %p129 = pneg %p123
    %p130 = scmp.eq.s32.totalorder %s9, 1
    %p131 = por %p129, %p130
    %p132 = scmp.ne.s32.totalorder %s124, %s127
    %p133 = scmp.eq.s32.totalorder %s9, 0
    %p134 = por %p132, %p133
    %p135 = scmp.ne.s32.totalorder %s124, %s127
    %p136 = scmp.eq.s32.totalorder %s14, 1
    %p137 = por %p135, %p136
    %p138 = scmp.ne.s32.totalorder %s127, %s128
    %p139 = scmp.eq.s32.totalorder %s14, 0
    %p140 = por %p138, %p139
    %p141 = scmp.ne.s32.totalorder %s127, %s128
    %p142 = scmp.eq.s32.totalorder %s15, 1
    %p143 = por %p141, %p142
    %p145 = scmp.ne.s32.totalorder %s128, %s144
    %p146 = scmp.eq.s32.totalorder %s15, 0
    %p147 = por %p145, %p146
    %p148 = scmp.le.s32.totalorder 1, %s9
    %p149 = scmp.lt.s32.totalorder %s9, 3
    %p150 = pnand %p148, %p149
    %p151 = pneg %p150
    // Predicated region
    $region9: #{tpu_custom_call.1} parent=5 // pred_check
      _
    $region10: #{tpu_custom_call.1} parent=5 // pred_check_branch
      %153 = sbr.rel (%p150) target = $region12
    $region11: #{tpu_custom_call.1} parent=5 // pred_region
      %s154 = ssub.s32 %s9, 1
      // Predicated region
      $region13: #{tpu_custom_call.1} parent=11 // pred_check
        %p155 = pneg %p82
      $region14: #{tpu_custom_call.1} parent=11 // pred_check_branch
        %157 = sbr.rel (%p155) target = $region16
      $region15: #{tpu_custom_call.1} parent=11 // pred_region
        %p158 = scmp.lt.s32.totalorder %s19, 0
        %s159 = scalar_select %p158, %s19, 0
        %s160 = smul.addr %s159, 8
        %s161 = scalar_lea.vmem %s1, %s160
      $region16: #{tpu_custom_call.1} parent=11 // pred_fallthru
        _
      // Predicated region
      $region17: #{tpu_custom_call.1} parent=11 // pred_check
        %p162 = pneg %p110
      $region18: #{tpu_custom_call.1} parent=11 // pred_check_branch
        %164 = sbr.rel (%p162) target = $region20
      $region19: #{tpu_custom_call.1} parent=11 // pred_region
        %s165 = smul.u32 3, %s20
        %p166 = scmp.lt.s32.totalorder %s165, 2
        %s167 = scalar_select %p166, %s165, 2
        %p168 = scmp.lt.s32.totalorder %s19, 0
        %s169 = scalar_select %p168, %s19, 0
        %s170 = sadd.s32 %s169, %s167
        %s171 = smul.addr %s170, 8
        %s172 = scalar_lea.vmem %s2, %s171
        %s173 = smul.u32 3, %s20
      $region20: #{tpu_custom_call.1} parent=11 // pred_fallthru
        _
    $region12: #{tpu_custom_call.1} parent=5 // pred_fallthru
      _
    %p174 = scmp.lt.s32.totalorder %s9, 2
    // Predicated region
    $region21: #{tpu_custom_call.1} parent=5 // pred_check
      %p175 = pneg %p174
    $region22: #{tpu_custom_call.1} parent=5 // pred_check_branch
      %177 = sbr.rel (%p175) target = $region24
    $region23: #{tpu_custom_call.1} parent=5 // pred_region
      // Predicated region
      $region25: #{tpu_custom_call.1} parent=23 // pred_check
        %p178 = pneg %p50
      $region26: #{tpu_custom_call.1} parent=23 // pred_check_branch
        %180 = sbr.rel (%p178) target = $region28
      $region27: #{tpu_custom_call.1} parent=23 // pred_region
        %s181 = smul.u32 3, %s17
        %p182 = scmp.lt.s32.totalorder %s18, 1
        %s183 = scalar_select %p182, %s18, 1
        %p184 = scmp.lt.s32.totalorder %s181, 2
        %s185 = scalar_select %p184, %s181, 2
        %s186 = smul.addr %s183, 3
        %s187 = sadd.s32 %s185, %s186
        %s188 = smul.addr %s187, 8
        %s189 = scalar_lea.vmem %s0, %s188
        %s190 = smul.u32 3, %s17
      $region28: #{tpu_custom_call.1} parent=23 // pred_fallthru
        _
    $region24: #{tpu_custom_call.1} parent=5 // pred_fallthru
      _
    %p191 = scmp.le.s32.totalorder 1, %s9
    %p192 = scmp.lt.s32.totalorder %s9, 3
    %p193 = pnand %p191, %p192
    %p194 = pneg %p193
    // Predicated region
    $region29: #{tpu_custom_call.1} parent=5 // pred_check
      _
    $region30: #{tpu_custom_call.1} parent=5 // pred_check_branch
      %196 = sbr.rel (%p193) target = $region32
    $region31: #{tpu_custom_call.1} parent=5 // pred_region
      %s197 = ssub.s32 %s9, 1
      %s198 = smul.u32 3, %s20
      %p199 = scmp.lt.s32.totalorder %s21, 1
      %s200 = scalar_select %p199, %s21, 1
      %p201 = scmp.lt.s32.totalorder %s198, 2
      %s202 = scalar_select %p201, %s198, 2
      %s203 = smul.addr %s200, 3
      %s204 = sadd.s32 %s202, %s203
      %s205 = smul.addr %s204, 8
      %s206 = scalar_lea.vmem %s0, %s205
      %p207 = pneg %p56
      %p208 = pneg %p53
      %p209 = scmp.lt.s32.totalorder %s19, 0
      %s210 = scalar_select %p209, %s19, 0
      %s211 = smul.addr %s210, 8
      %s212 = scalar_lea.vmem %s1, %s211
      %p213 = pneg %p82
      %p214 = pneg %p79
      %s215 = smul.u32 3, %s20
      %p216 = scmp.lt.s32.totalorder %s215, 2
      %s217 = scalar_select %p216, %s215, 2
      %p218 = scmp.lt.s32.totalorder %s19, 0
      %s219 = scalar_select %p218, %s19, 0
      %s220 = sadd.s32 %s219, %s217
      %s221 = smul.addr %s220, 8
      %s222 = scalar_lea.vmem %s2, %s221
      %p223 = pneg %p110
      %p224 = pneg %p107
      %p225 = pneg %p140
      %p226 = pneg %p137
      %s227 = smul.u32 3, %s20
      %p228 = scmp.lt.s32.totalorder %s21, 1
      %s229 = scalar_select %p228, %s21, 1
      %p230 = scmp.lt.s32.totalorder %s227, 2
      %s231 = scalar_select %p230, %s227, 2
      %p232 = scmp.lt.s32.totalorder %s19, 0
      %s233 = scalar_select %p232, %s19, 0
      %s234 = sadd.s32 %s233, %s231
      %s235 = smul.addr %s229, 3
      %s236 = sadd.s32 %s234, %s235
      %s237 = smul.addr %s236, 8
      %s238 = scalar_lea.vmem %s3, %s237
      %s239 = smul.u32 3, %s20
      %p240 = scmp.lt.s32.totalorder %s21, 1
      %s241 = scalar_select %p240, %s21, 1
      %p242 = scmp.lt.s32.totalorder %s239, 2
      %s243 = scalar_select %p242, %s239, 2
      %s244 = smul.addr %s241, 3
      %s245 = sadd.s32 %s243, %s244
      %s246 = smul.addr %s245, 8
      %s247 = scalar_lea.vmem %s0, %s246
      %s248 = smul.u32 3, %s20
      %p249 = scmp.lt.s32.totalorder %s19, 0
      %s250 = scalar_select %p249, %s19, 0
      %s251 = smul.addr %s250, 8
      %s252 = scalar_lea.vmem %s1, %s251
      %s253 = smul.u32 3, %s20
      %p254 = scmp.lt.s32.totalorder %s253, 2
      %s255 = scalar_select %p254, %s253, 2
      %p256 = scmp.lt.s32.totalorder %s19, 0
      %s257 = scalar_select %p256, %s19, 0
      %s258 = sadd.s32 %s257, %s255
      %s259 = smul.addr %s258, 8
      %s260 = scalar_lea.vmem %s2, %s259
      %s261 = smul.u32 3, %s20
      %s262 = smul.u32 3, %s20
      %p263 = scmp.lt.s32.totalorder %s21, 1
      %s264 = scalar_select %p263, %s21, 1
      %p265 = scmp.lt.s32.totalorder %s262, 2
      %s266 = scalar_select %p265, %s262, 2
      %p267 = scmp.lt.s32.totalorder %s19, 0
      %s268 = scalar_select %p267, %s19, 0
      %s269 = sadd.s32 %s268, %s266
      %s270 = smul.addr %s264, 3
      %s271 = sadd.s32 %s269, %s270
      %s272 = smul.addr %s271, 8
      %s273 = scalar_lea.vmem %s3, %s272
      %s274 = smul.u32 3, %s20
      %v275 = vld [vmem:[%s247] sm:$0xff]
      %v276 = vld [vmem:[%s247 + $0x8] sm:$0xff]
      %v277 = vld [vmem:[%s247 + $0x10] sm:$0x1]
      %v278 = vld [vmem:[%s252] sm:$0xff]
      %v279 = vld [vmem:[%s252 + $0x8] sm:$0xff]
      %v280 = vld [vmem:[%s252 + $0x10] sm:$0xff]
      %v281 = vld [vmem:[%s252 + $0x18] sm:$0xff]
      %v282 = vld [vmem:[%s252 + $0x20] sm:$0xff]
      %v283 = vld [vmem:[%s252 + $0x28] sm:$0xff]
      %v284 = vld [vmem:[%s252 + $0x30] sm:$0xff]
      %v285 = vld [vmem:[%s252 + $0x38] sm:$0xff]
      %v286 = vld [vmem:[%s260] sm:$0xff]
      %v287 = vld [vmem:[%s260 + $0x8] sm:$0xff]
      %v288 = vld [vmem:[%s260 + $0x10] sm:$0x1]
      %vm289 = vcmask 523264
      %v291 = vsel %vm289, %v275, 0
      %v294 = vsel %vm289, %v276, 0
      %v297 = vsel %vm289, %v277, 0
      %299 = vmatprep.subr.mxu0 0.0
      %300 = vmatpush1.msra.mxu0 %v278
      %301 = vmatprep.subr.mxu0 0.0
      %302 = vmatpush1.msra.mxu0 %v279
      %303 = vmatprep.subr.mxu0 0.0
      %304 = vmatpush1.msra.mxu0 %v280
      %305 = vmatprep.subr.mxu0 0.0
      %306 = vmatpush1.msra.mxu0 %v281
      %307 = vmatprep.subr.mxu0 0.0
      %308 = vmatpush1.msra.mxu0 %v282
      %309 = vmatprep.subr.mxu0 0.0
      %310 = vmatpush1.msra.mxu0 %v283
      %311 = vmatprep.subr.mxu0 0.0
      %312 = vmatpush1.msra.mxu0 %v284
      %313 = vmatprep.subr.mxu0 0.0
      %314 = vmatpush1.msra.mxu0 %v285
      %315 = vmatprep.subr.mxu0 0.0
      %316 = vmatpush1.msra.mxu0 0.0
      %317 = vmatprep.subr.mxu0 0.0
      %318 = vmatpush1.msra.mxu0 0.0
      %319 = vmatprep.subr.mxu0 0.0
      %320 = vmatpush1.msra.mxu0 0.0
      %321 = vmatprep.subr.mxu0 0.0
      %322 = vmatpush1.msra.mxu0 0.0
      %323 = vmatprep.subr.mxu0 0.0
      %324 = vmatpush1.msra.mxu0 0.0
      %325 = vmatprep.subr.mxu0 0.0
      %326 = vmatpush1.msra.mxu0 0.0
      %327 = vmatprep.subr.mxu0 0.0
      %328 = vmatpush1.msra.mxu0 0.0
      %329 = vmatprep.subr.mxu0 0.0
      %330 = vmatpush1.msra.mxu0 0.0
      %331 = vmatprep.subr.mxu0 0.0
      %332 = vmatpush1.msra.mxu0 0.0
      %333 = vmatprep.subr.mxu0 0.0
      %334 = vmatpush1.msra.mxu0 0.0
      %335 = vmatprep.subr.mxu0 0.0
      %336 = vmatpush1.msra.mxu0 0.0
      %337 = vmatprep.subr.mxu0 0.0
      %338 = vmatpush1.msra.mxu0 0.0
      %339 = vmatprep.subr.mxu0 0.0
      %340 = vmatpush1.msra.mxu0 0.0
      %341 = vmatprep.subr.mxu0 0.0
      %342 = vmatpush1.msra.mxu0 0.0
      %343 = vmatprep.subr.mxu0 0.0
      %344 = vmatpush1.msra.mxu0 0.0
      %345 = vmatprep.subr.mxu0 0.0
      %346 = vmatpush1.msra.mxu0 0.0
      %347 = vmatprep.subr.mxu0 0.0
      %348 = vmatpush1.msra.mxu0 0.0
      %349 = vmatprep.subr.mxu0 0.0
      %350 = vmatpush1.msra.mxu0 0.0
      %351 = vmatprep.subr.mxu0 0.0
      %352 = vmatpush1.msra.mxu0 0.0
      %353 = vmatprep.subr.mxu0 0.0
      %354 = vmatpush1.msra.mxu0 0.0
      %355 = vmatprep.subr.mxu0 0.0
      %356 = vmatpush1.msra.mxu0 0.0
      %357 = vmatprep.subr.mxu0 0.0
      %358 = vmatpush1.msra.mxu0 0.0
      %359 = vmatprep.subr.mxu0 0.0
      %360 = vmatpush1.msra.mxu0 0.0
      %361 = vmatprep.subr.mxu0 0.0
      %362 = vmatpush1.msra.mxu0 0.0
      %363 = vmatprep.mubr.f32.mxu0 0.0
      %364 = vmatmul.mubr.f32.gmra.mrb[0].mxu0 %v291
      %v365 = vpop.f32.mrb[0].mxu0
      %v366 = vadd.f32 %v286, %v365
      %v367 = vpop.f32.mrb[0].mxu0
      %368 = vmatprep.mubr.f32.mxu0 0.0
      %369 = vmatmul.mubr.f32.gmra.mrb[0].mxu0 %v294
      %v370 = vpop.f32.mrb[0].mxu0
      %v371 = vadd.f32 %v287, %v370
      %v372 = vpop.f32.mrb[0].mxu0
      %373 = vmatprep.mubr.f32.mxu0 0.0
      %374 = vmatmul.mubr.f32.gmra.mrb[0].mxu0 %v297
      %v375 = vpop.f32.mrb[0].mxu0
      %v376 = vadd.f32 %v288, %v375
      %v377 = vpop.f32.mrb[0].mxu0
      %378 = vdwg.mxu0
      %379 = vst [vmem:[%s273] sm:$0xff] %v366
      %380 = vst [vmem:[%s273 + $0x8] sm:$0xff] %v371
      %381 = vst [vmem:[%s273 + $0x10] sm:$0x1] %v376
      %s382 = smul.u32 3, %s20
      %p383 = scmp.lt.s32.totalorder %s21, 1
      %s384 = scalar_select %p383, %s21, 1
      %p385 = scmp.lt.s32.totalorder %s382, 2
      %s386 = scalar_select %p385, %s382, 2
      %p387 = scmp.lt.s32.totalorder %s19, 0
      %s388 = scalar_select %p387, %s19, 0
      %s389 = sadd.s32 %s388, %s386
      %s390 = smul.addr %s384, 3
      %s391 = sadd.s32 %s389, %s390
      %s392 = smul.addr %s391, 8
      %s393 = scalar_lea.vmem %s3, %s392
      // Predicated region
      $region33: #{tpu_custom_call.1} parent=31 // pred_check
        %p394 = pneg %p137
      $region34: #{tpu_custom_call.1} parent=31 // pred_check_branch
        %396 = sbr.rel (%p394) target = $region36
      $region35: #{tpu_custom_call.1} parent=31 // pred_region
        %s397 = smul.u32 3, %s20
      $region36: #{tpu_custom_call.1} parent=31 // pred_fallthru
        _
    $region32: #{tpu_custom_call.1} parent=5 // pred_fallthru
      _
    %p398 = scmp.le.s32.totalorder 2, %s9
    // Predicated region
    $region37: #{tpu_custom_call.1} parent=5 // pred_check
      %p399 = pneg %p398
    $region38: #{tpu_custom_call.1} parent=5 // pred_check_branch
      %401 = sbr.rel (%p399) target = $region40
    $region39: #{tpu_custom_call.1} parent=5 // pred_region
      %s402 = ssub.s32 %s9, 2
      // Predicated region
      $region41: #{tpu_custom_call.1} parent=39 // pred_check
        %p403 = pneg %p143
      $region42: #{tpu_custom_call.1} parent=39 // pred_check_branch
        %405 = sbr.rel (%p403) target = $region44
      $region43: #{tpu_custom_call.1} parent=39 // pred_region
        %s406 = smul.u32 3, %s23
        %p407 = scmp.lt.s32.totalorder %s24, 1
        %s408 = scalar_select %p407, %s24, 1
        %p409 = scmp.lt.s32.totalorder %s406, 2
        %s410 = scalar_select %p409, %s406, 2
        %p411 = scmp.lt.s32.totalorder %s22, 0
        %s412 = scalar_select %p411, %s22, 0
        %s413 = sadd.s32 %s412, %s410
        %s414 = smul.addr %s408, 3
        %s415 = sadd.s32 %s413, %s414
        %s416 = smul.addr %s415, 8
        %s417 = scalar_lea.vmem %s3, %s416
      $region44: #{tpu_custom_call.1} parent=39 // pred_fallthru
        _
    $region40: #{tpu_custom_call.1} parent=5 // pred_fallthru
      _
  $region6: #{tpu_custom_call.1} parent=0 // loop_footer
    %s13 = sadd.s32 1, %s9
  $region7: #{tpu_custom_call.1} parent=0 // loop_footer_branch
    %8 = sbr.rel target = $region3
  $region8: #{tpu_custom_call.1} parent=0 // loop_exit
    _

</llo_original>
